<compile_context>
chip_gen: v7x
topology: tpu7x:2x2x1
jax: 0.10.0
libtpu: 0.0.40
codegen_flags: <defaults>
</compile_context>

<pallas_src>
import functools

import jax
import jax.numpy as jnp
from jax.experimental import pallas as pl
from jax.experimental.pallas import tpu as pltpu


def _round_up(n, m):
    return (n + m - 1) // m * m


def _cdiv(n, m):
    return (n + m - 1) // m


# Rows of x per TensorCore (~1 MiB of streamed x at d=32) before it is worth
# splitting the batch into >=2 tiles so v7x's two TCs both get work.
_SPLIT_MIN_ROWS = 8192


def mlp_probe_kernel(x_ref, w1_ref, b1_ref, w2_ref, b2_ref, o_ref):
    """One batch tile of sigmoid(relu(x @ W1^T + b1) @ W2^T + b2).

    x_ref:  (bm, d)  float  -- streamed batch tile (the only per-step DMA)
    w1_ref: (d, Hp)  bf16   -- resident W1^T, H zero-padded to 128 lanes
    b1_ref: (1, Hp)  f32    -- resident
    w2_ref: (1, Hp)  bf16   -- resident W2 row, zero-padded
    b2_ref: (1, 1)   f32    -- SMEM scalar
    o_ref:  (1, bm)  f32    -- lane-dense output row (leading grid dim squeezed)
    """
    # Cast x to bf16 inside the kernel (cheap VPU op) -- no wrapper-side HBM
    # read+write pass for a cast or a pad.
    x_bf16 = x_ref[...].astype(jnp.bfloat16)

    # Layer 1 on the MXU (bf16 x bf16 -> f32 accumulate); bias + ReLU in f32 on the VPU.
    h = jnp.dot(x_bf16, w1_ref[...], preferred_element_type=jnp.float32)
    h = jnp.maximum(h + b1_ref[...], 0.0)                      # (bm, Hp) f32

    # Layer 2 (H -> 1): contract w2's lane axis against h's lane axis (same
    # dimension_numbers as flash-attention's q.kT), yielding a lane-dense (1, bm)
    # row directly -- no 1-lane masked (bm,1) stores, no sublane->lane relayout.
    # bf16 operands halve MXU work / any operand-feed relayout bytes.
    # TODO(synk): confirm via pl.lower_as_mlir that no explicit transpose of h is
    # materialized on the target Mosaic version (expected: folded into the matmul).
    h_bf16 = h.astype(jnp.bfloat16)
    row = jax.lax.dot_general(
        w2_ref[...], h_bf16, (((1,), (1,)), ((), ())),
        preferred_element_type=jnp.float32)                    # (1, bm) f32
    row = row + b2_ref[0, 0]                                   # scalar bias from SMEM
    o_ref[...] = jax.nn.sigmoid(row).astype(o_ref.dtype)


@functools.partial(jax.jit, static_argnames=("block_m",))
def mlp_probe_forward(x, w1, b1, w2, b2, *, block_m=8192):
    """MLPProbe forward: sigmoid(relu(x @ W1^T + b1) @ W2^T + b2).

    x:  (B, d) float32 (or bf16)
    w1: (H, d), b1: (H,)   -- torch nn.Linear(d, H) layout
    w2: (1, H), b2: (1,)   -- torch nn.Linear(H, 1) layout
    Returns (B, 1) float32.
    """
    B, d = x.shape
    H = w1.shape[0]
    Hp = _round_up(H, 128)   # 100 -> 128: dense lanes everywhere; weights are tiny.

    # ---- batch tile size --------------------------------------------------
    # Per-grid-step fixed cost ~0.35us, so maximize the tile under the scoped-VMEM
    # budget.  Worst-case (no buffer reuse) VMEM per row of bm:
    #   x f32 double-buffered (d=32 lane-pads to 128): 2 * 128*4 = 1024 B
    #   x bf16 cast + h f32 + h bf16 (128 lanes):      256 + 512 + 256 = 1024 B
    # => ~2 KiB/row, ~16 MiB at bm=8192; the scoped limit is raised to 32 MiB below.
    bm_cap = _round_up(B, 8)
    if B >= 2 * _SPLIT_MIN_ROWS:
        # Large batch: ensure >=2 roughly even tiles so ("parallel",) lets v7x's
        # two TensorCores split them (no effect on v5e/v6e's single TC).
        bm_cap = min(bm_cap, _round_up(_cdiv(B, 2), 8))
    bm = max(8, min(block_m, bm_cap))
    num_blocks = _cdiv(B, bm)   # ragged last tile handled by the grid, not jnp.pad

    # Resident (DMA'd-once) weights/biases.  Zero-padding H keeps the padded lanes
    # exactly zero through ReLU and layer 2, so numerics are unchanged.
    w1_t = jnp.zeros((d, Hp), jnp.bfloat16).at[:, :H].set(w1.T.astype(jnp.bfloat16))
    b1_row = jnp.zeros((1, Hp), jnp.float32).at[:, :H].set(
        b1.reshape(1, H).astype(jnp.float32))
    w2_row = jnp.zeros((1, Hp), jnp.bfloat16).at[:, :H].set(
        w2.reshape(1, H).astype(jnp.bfloat16))
    b2_s = b2.reshape(1, 1).astype(jnp.float32)

    cost = pl.CostEstimate(
        flops=2 * B * d * H + 2 * B * H,
        transcendentals=B,                                     # sigmoid -> exp
        bytes_accessed=(B * d * x.dtype.itemsize               # streamed x
                        + num_blocks * bm * 4                  # output rows
                        + d * Hp * 2 + Hp * 4 + Hp * 2 + 4),   # resident weights
    )

    out = pl.pallas_call(
        mlp_probe_kernel,
        out_shape=jax.ShapeDtypeStruct((num_blocks, 1, bm), jnp.float32),
        grid_spec=pl.GridSpec(
            grid=(num_blocks,),
            in_specs=[
                # x: the only operand whose block index changes per step (streamed).
                pl.BlockSpec((bm, d), lambda i: (i, 0)),
                # Weights/biases: constant index_map -> DMA'd once, VMEM-resident.
                pl.BlockSpec((d, Hp), lambda i: (0, 0)),
                pl.BlockSpec((1, Hp), lambda i: (0, 0)),
                pl.BlockSpec((1, Hp), lambda i: (0, 0)),
                # b2: scalar in SMEM (no 1-lane VMEM vreg load).
                pl.BlockSpec(memory_space=pltpu.MemorySpace.SMEM),
            ],
            # Lane-dense rows; leading grid dim squeezed out of the kernel view.
            out_specs=pl.BlockSpec((None, 1, bm), lambda i: (i, 0, 0)),
        ),
        compiler_params=pltpu.CompilerParams(
            dimension_semantics=("parallel",),     # v7x's 2 TCs split the batch tiles
            vmem_limit_bytes=32 * 1024 * 1024,     # above v5e's 16 MiB scoped default
        ),
        cost_estimate=cost,
    )(x, w1_t, b1_row, w2_row, b2_s)

    # (num_blocks, 1, bm) lane-dense rows -> (B, 1) column; drop the ragged tail.
    return out.reshape(num_blocks * bm, 1)[:B]


def reference_forward_bf16(x, w1, b1, w2, b2):
    # Mirrors the kernel's numerics (bf16 matmul operands, f32 accumulation).
    h = jnp.dot(x.astype(jnp.bfloat16), w1.T.astype(jnp.bfloat16),
                preferred_element_type=jnp.float32) + b1.reshape(1, -1)
    h = jnp.maximum(h, 0.0)
    o = jnp.dot(h.astype(jnp.bfloat16), w2.T.astype(jnp.bfloat16),
                preferred_element_type=jnp.float32) + b2.reshape(1, 1)
    return jax.nn.sigmoid(o)


def reference_forward_f32(x, w1, b1, w2, b2):
    h = jnp.maximum(x @ w1.T + b1.reshape(1, -1), 0.0)
    return jax.nn.sigmoid(h @ w2.T + b2.reshape(1, 1))


if __name__ == "__main__":
    # Small shapes consistent with the module: batch=8, d=32, hidden=100.
    B, D, H = 8, 32, 100

    key = jax.random.PRNGKey(0)
    kx, k1, kb1, k2, kb2 = jax.random.split(key, 5)

    x = jax.random.normal(kx, (B, D), dtype=jnp.float32)

    # PyTorch nn.Linear-style parameters (weight is (out_features, in_features)).
    bound1 = 1.0 / jnp.sqrt(D)
    w1 = jax.random.uniform(k1, (H, D), minval=-bound1, maxval=bound1, dtype=jnp.float32)
    b1 = jax.random.uniform(kb1, (H,), minval=-bound1, maxval=bound1, dtype=jnp.float32)
    bound2 = 1.0 / jnp.sqrt(H)
    w2 = jax.random.uniform(k2, (1, H), minval=-bound2, maxval=bound2, dtype=jnp.float32)
    b2 = jax.random.uniform(kb2, (1,), minval=-bound2, maxval=bound2, dtype=jnp.float32)

    out = jax.block_until_ready(mlp_probe_forward(x, w1, b1, w2, b2))
    assert out.shape == (B, 1), out.shape

    ref_bf16 = reference_forward_bf16(x, w1, b1, w2, b2)
    ref_f32 = reference_forward_f32(x, w1, b1, w2, b2)
    assert jnp.allclose(out, ref_bf16, atol=1e-4, rtol=1e-4), (
        f"max abs err vs bf16 ref = {jnp.max(jnp.abs(out - ref_bf16))}"
    )
    assert jnp.allclose(out, ref_f32, atol=2e-2), (
        f"max abs err vs f32 ref = {jnp.max(jnp.abs(out - ref_f32))}"
    )

    # Ragged batch + multi-tile path (no jnp.pad anywhere): B=50 with a tiny tile so
    # the grid has 4 blocks and the last block is partial.
    B2 = 50
    x2 = jax.random.normal(jax.random.fold_in(kx, 1), (B2, D), dtype=jnp.float32)
    out2 = jax.block_until_ready(mlp_probe_forward(x2, w1, b1, w2, b2, block_m=16))
    assert out2.shape == (B2, 1), out2.shape
    ref2 = reference_forward_bf16(x2, w1, b1, w2, b2)
    assert jnp.allclose(out2, ref2, atol=1e-4, rtol=1e-4), (
        f"max abs err (ragged) vs bf16 ref = {jnp.max(jnp.abs(out2 - ref2))}"
    )

    print("KERNEL_OK")
</pallas_src>

<mosaic_0001>
module attributes {stable_mosaic.version = 11 : i64} {
  func.func @mlp_probe_kernel(%arg0: i32, %arg1: memref<8x32xf32, #tpu.memory_space<vmem>>, %arg2: memref<32x128xbf16, #tpu.memory_space<vmem>>, %arg3: memref<1x128xf32, #tpu.memory_space<vmem>>, %arg4: memref<1x128xbf16, #tpu.memory_space<vmem>>, %arg5: memref<1x1xf32, #tpu.memory_space<smem>>, %arg6: memref<1x1x8xf32, #tpu.memory_space<vmem>>) attributes {dimension_semantics = [#tpu.dimension_semantics<parallel>], iteration_bounds = array<i64: 1>, scalar_prefetch = 0 : i64, scratch_operands = 0 : i64, tpu.core_type = #tpu.core_type<tc>, window_params = [{transform_indices = @transform_0, window_bounds = array<i64: 8, 32>}, {pipeline_mode = #tpu.pipeline_mode<synchronous>, transform_indices = @transform_1, window_bounds = array<i64: 32, 128>}, {pipeline_mode = #tpu.pipeline_mode<synchronous>, transform_indices = @transform_2, window_bounds = array<i64: 1, 128>}, {pipeline_mode = #tpu.pipeline_mode<synchronous>, transform_indices = @transform_3, window_bounds = array<i64: 1, 128>}, {transform_indices = @transform_4, window_bounds = array<i64: 1, 1>}, {transform_indices = @transform_5, window_bounds = array<i64: 1, 1, 8>}]} {
    %c0 = arith.constant 0 : index
    %c0_0 = arith.constant 0 : index
    %0 = vector.load %arg1[%c0, %c0_0] : memref<8x32xf32, #tpu.memory_space<vmem>>, vector<8x32xf32>
    %1 = arith.truncf %0 : vector<8x32xf32> to vector<8x32xbf16>
    %c0_1 = arith.constant 0 : index
    %c0_2 = arith.constant 0 : index
    %2 = vector.load %arg2[%c0_1, %c0_2] : memref<32x128xbf16, #tpu.memory_space<vmem>>, vector<32x128xbf16>
    %cst = arith.constant dense<0.000000e+00> : vector<8x128xf32>
    %3 = tpu.matmul %1, %2, %cst {dimension_numbers = #tpu.dot_dimension_numbers<[1], [0], [0], [1], [0, 0, 1, 1], [], []>} : vector<8x32xbf16>, vector<32x128xbf16>, vector<8x128xf32> -> vector<8x128xf32>
    %c0_3 = arith.constant 0 : index
    %c0_4 = arith.constant 0 : index
    %4 = vector.load %arg3[%c0_3, %c0_4] : memref<1x128xf32, #tpu.memory_space<vmem>>, vector<1x128xf32>
    %5 = vector.broadcast %4 : vector<1x128xf32> to vector<8x128xf32>
    %6 = arith.addf %3, %5 : vector<8x128xf32>
    %cst_5 = arith.constant 0.000000e+00 : f32
    %7 = vector.broadcast %cst_5 : f32 to vector<8x128xf32>
    %8 = arith.maximumf %6, %7 : vector<8x128xf32>
    %9 = arith.truncf %8 : vector<8x128xf32> to vector<8x128xbf16>
    %c0_6 = arith.constant 0 : index
    %c0_7 = arith.constant 0 : index
    %10 = vector.load %arg4[%c0_6, %c0_7] : memref<1x128xbf16, #tpu.memory_space<vmem>>, vector<1x128xbf16>
    %cst_8 = arith.constant dense<0.000000e+00> : vector<1x8xf32>
    %11 = tpu.matmul %10, %9, %cst_8 {dimension_numbers = #tpu.dot_dimension_numbers<[1], [1], [0], [0], [0, 0, 1, 0], [], []>} : vector<1x128xbf16>, vector<8x128xbf16>, vector<1x8xf32> -> vector<1x8xf32>
    %c0_9 = arith.constant 0 : index
    %c0_10 = arith.constant 0 : index
    %12 = memref.load %arg5[%c0_9, %c0_10] : memref<1x1xf32, #tpu.memory_space<smem>>
    %13 = vector.broadcast %12 : f32 to vector<1x8xf32>
    %14 = arith.addf %11, %13 : vector<1x8xf32>
    %15 = arith.negf %14 : vector<1x8xf32>
    %16 = math.exp %15 : vector<1x8xf32>
    %cst_11 = arith.constant 1.000000e+00 : f32
    %17 = vector.broadcast %cst_11 : f32 to vector<1x8xf32>
    %18 = arith.addf %17, %16 : vector<1x8xf32>
    %19 = arith.divf %17, %18 : vector<1x8xf32>
    %c0_12 = arith.constant 0 : index
    %c0_13 = arith.constant 0 : index
    %c0_14 = arith.constant 0 : index
    %20 = vector.load %arg6[%c0_12, %c0_13, %c0_14] : memref<1x1x8xf32, #tpu.memory_space<vmem>>, vector<1x1x8xf32>
    %21 = vector.shape_cast %20 : vector<1x1x8xf32> to vector<1x8xf32>
    %22 = vector.shape_cast %19 : vector<1x8xf32> to vector<1x1x8xf32>
    tpu.vector_store %arg6[%c0_12, %c0_13, %c0_14], %22 {strides = array<i32>} : memref<1x1x8xf32, #tpu.memory_space<vmem>>, vector<1x1x8xf32>,
    return
  }
  func.func @transform_0(%arg0: i32) -> (i32, i32) {
    %c0_i32 = arith.constant 0 : i32
    %c0_i32_0 = arith.constant 0 : i32
    return %arg0, %c0_i32 : i32, i32
  }
  func.func @transform_1(%arg0: i32) -> (i32, i32) {
    %c0_i32 = arith.constant 0 : i32
    %c0_i32_0 = arith.constant 0 : i32
    %c0_i32_1 = arith.constant 0 : i32
    return %c0_i32, %c0_i32_0 : i32, i32
  }
  func.func @transform_2(%arg0: i32) -> (i32, i32) {
    %c0_i32 = arith.constant 0 : i32
    %c0_i32_0 = arith.constant 0 : i32
    %c0_i32_1 = arith.constant 0 : i32
    return %c0_i32, %c0_i32_0 : i32, i32
  }
  func.func @transform_3(%arg0: i32) -> (i32, i32) {
    %c0_i32 = arith.constant 0 : i32
    %c0_i32_0 = arith.constant 0 : i32
    %c0_i32_1 = arith.constant 0 : i32
    return %c0_i32, %c0_i32_0 : i32, i32
  }
  func.func @transform_4(%arg0: i32) -> (i32, i32) {
    %c0_i32 = arith.constant 0 : i32
    %c0_i32_0 = arith.constant 0 : i32
    %c0_i32_1 = arith.constant 0 : i32
    return %c0_i32, %c0_i32_0 : i32, i32
  }
  func.func @transform_5(%arg0: i32) -> (i32, i32, i32) {
    %c0_i32 = arith.constant 0 : i32
    %c0_i32_0 = arith.constant 0 : i32
    %c0_i32_1 = arith.constant 0 : i32
    return %arg0, %c0_i32, %c0_i32_0 : i32, i32, i32
  }
}

</mosaic_0001>

<llo_original>
// kernel: mlp_probe_forward.1
$region0: #{mlp_probe_forward.1}
  #allocation0 [shape = 'u32[]', space=smem, size = 0x4, offset = 0x4, fixed_abs, tag = 'smem constant byte address 0x4 - core index']
  #allocation1 [shape = 'u32[144,128]{1,0:T(1,128)}', space=vmem, size = 0x12000, scoped, tag = 'internal scratch']
  #allocation2 [shape = 'f32[1,1]{1,0:T(1,128)S(6)}', space=smem, size = 0x200, scoped, tag = 'scoped memory for mlp_probe_forward.1']
  %s0 = inlined_call_operand.vmem [shape: f32[8,32], index: 0, kind: input, shape index: {}]
  %s1 = inlined_call_operand.vmem [shape: bf16[32,128], index: 1, kind: input, shape index: {}]
  %s2 = inlined_call_operand.vmem [shape: f32[1,128], index: 2, kind: input, shape index: {}]
  %s3 = inlined_call_operand.vmem [shape: bf16[1,128], index: 3, kind: input, shape index: {}]
  %s4 = inlined_call_operand.<no memory space> [shape: f32[1,1], index: 4, kind: input, shape index: {}]
  %s5 = inlined_call_operand.hbm [shape: f32[1,1,8], index: 5, kind: output, shape index: {}]
  %s6 = sld [smem:[#allocation0]]
  $region30: #{mlp_probe_forward.1} parent=0
    _
  %s8 = ssub.s32 1, %s6
  %s9 = scalar_select 0, %s8, %s6
  %10 = sst [smem:[#allocation2]] %s4
  $region1: #{mlp_probe_forward.1} parent=0
    #allocation3 [shape = 'u8[512]{0}', space=vmem, size = 0x400, scoped, tag = 'output window, operand 0, single buffered']
    #allocation4 [shape = 's32[1]{0}', space=sflag, size = 0x4, scoped, tag = 'scoped memory for mlp_probe_forward.1']
    %11 = vsyncpa [#allocation4], 0
    // Predicated region
    $region2: #{mlp_probe_forward.1} parent=1 // pred_check
      _
    $region3: #{mlp_probe_forward.1} parent=1 // pred_check_branch
      %13 = sbr.rel (0) target = $region5
    $region4: #{mlp_probe_forward.1} parent=1 // pred_region
      _
    $region5: #{mlp_probe_forward.1} parent=1 // pred_fallthru
      _
    // Predicated region
    $region6: #{mlp_probe_forward.1} parent=1 // pred_check
      _
    $region7: #{mlp_probe_forward.1} parent=1 // pred_check_branch
      %15 = sbr.rel (0) target = $region9
    $region8: #{mlp_probe_forward.1} parent=1 // pred_region
      _
    $region9: #{mlp_probe_forward.1} parent=1 // pred_fallthru
      _
    // Predicated region
    $region10: #{mlp_probe_forward.1} parent=1 // pred_check
      _
    $region11: #{mlp_probe_forward.1} parent=1 // pred_check_branch
      %17 = sbr.rel (0) target = $region13
    $region12: #{mlp_probe_forward.1} parent=1 // pred_region
      _
    $region13: #{mlp_probe_forward.1} parent=1 // pred_fallthru
      _
    // Predicated region
    $region14: #{mlp_probe_forward.1} parent=1 // pred_check
      _
    $region15: #{mlp_probe_forward.1} parent=1 // pred_check_branch
      %19 = sbr.rel (0) target = $region17
    $region16: #{mlp_probe_forward.1} parent=1 // pred_region
      _
    $region17: #{mlp_probe_forward.1} parent=1 // pred_fallthru
      _
    // Predicated region
    $region18: #{mlp_probe_forward.1} parent=1 // pred_check
      _
    $region19: #{mlp_probe_forward.1} parent=1 // pred_check_branch
      %21 = sbr.rel (0) target = $region21
    $region20: #{mlp_probe_forward.1} parent=1 // pred_region
      _
    $region21: #{mlp_probe_forward.1} parent=1 // pred_fallthru
      _
    %v23 = vld [vmem:[%s0] sm:$0xff]
    %v24 = vpack.c.bf16 %v23, %v23
    %v25 = vld [vmem:[%s1] sm:$0xf]
    %v26 = vld [vmem:[%s1 + $0x4] sm:$0xf]
    %v27 = vld [vmem:[%s1 + $0x8] sm:$0xf]
    %v28 = vld [vmem:[%s1 + $0xc] sm:$0xf]
    %v29 = vld [vmem:[%s2] sm:$0x1]
    %v31 = vlaneseq
    %v32 = vshrl.u32 %v31, 7
    %v33 = vsub.s32 0, %v32
    %v34 = vrot.slane %v29, %v33
    %v40 = vunpack.c.l.b16 %v25
    %v41 = vunpack.c.l.b16 %v26
    %v42 = vunpack.c.l.b16 %v27
    %v43 = vunpack.c.l.b16 %v28
    %v44 = vpack.c.b16 %v41, %v40
    %v45 = vpack.c.b16 %v43, %v42
    %vm48 = vcmask 261120
    %v50 = vsel %vm48, %v24, 0
    %52 = vmatprep.subr.bf16.mxu0 0
    %53 = vmatpush1.bf16.msra.mxu0 %v44
    %54 = vmatprep.subr.bf16.mxu0 0
    %55 = vmatpush1.bf16.msra.mxu0 %v45
    %56 = vmatprep.subr.bf16.mxu0 0
    %57 = vmatpush1.bf16.msra.mxu0 0
    %58 = vmatprep.subr.bf16.mxu0 0
    %59 = vmatpush1.bf16.msra.mxu0 0
    %60 = vmatprep.subr.bf16.mxu0 0
    %61 = vmatpush1.bf16.msra.mxu0 0
    %62 = vmatprep.subr.bf16.mxu0 0
    %63 = vmatpush1.bf16.msra.mxu0 0
    %64 = vmatprep.subr.bf16.mxu0 0
    %65 = vmatpush1.bf16.msra.mxu0 0
    %66 = vmatprep.subr.bf16.mxu0 0
    %67 = vmatpush1.bf16.msra.mxu0 0
    %68 = vmatprep.subr.bf16.mxu0 0
    %69 = vmatpush1.bf16.msra.mxu0 0
    %70 = vmatprep.subr.bf16.mxu0 0
    %71 = vmatpush1.bf16.msra.mxu0 0
    %72 = vmatprep.subr.bf16.mxu0 0
    %73 = vmatpush1.bf16.msra.mxu0 0
    %74 = vmatprep.subr.bf16.mxu0 0
    %75 = vmatpush1.bf16.msra.mxu0 0
    %76 = vmatprep.subr.bf16.mxu0 0
    %77 = vmatpush1.bf16.msra.mxu0 0
    %78 = vmatprep.subr.bf16.mxu0 0
    %79 = vmatpush1.bf16.msra.mxu0 0
    %80 = vmatprep.subr.bf16.mxu0 0
    %81 = vmatpush1.bf16.msra.mxu0 0
    %82 = vmatprep.subr.bf16.mxu0 0
    %83 = vmatpush1.bf16.msra.mxu0 0
    %84 = vmatprep.mubr.bf16.mxu0 0
    %85 = vmatmul.mubr.bf16.gmra.mrb[0].mxu0 %v50
    %v86 = vpop.f32.mrb[0].mxu0
    %v87 = vadd.f32 %v34, %v86
    %v88 = vpop.f32.mrb[0].mxu0
    %v89 = vpop.f32.mrb[0].mxu0
    %v90 = vpop.f32.mrb[0].mxu0
    %91 = vdwg.mxu0
    %v92 = vmax.f32 %v87, 0.0
    %v93 = vpack.c.bf16 %v92, %v92
    %v94 = vld [vmem:[%s3] sm:$0x1]
    %s95 = sld [smem:[#allocation2]]
    %v96 = vstv %s95
    %97 = vmatprep.subr.bf16.mxu0 0
    %98 = vmatpush1.bf16.xpose.msra.mxu0 %v93
    %99 = vmatprep.subr.bf16.mxu0 0
    %100 = vmatpush1.bf16.xpose.msra.mxu0 0
    %101 = vmatprep.subr.bf16.mxu0 0
    %102 = vmatpush1.bf16.xpose.msra.mxu0 0
    %103 = vmatprep.subr.bf16.mxu0 0
    %104 = vmatpush1.bf16.xpose.msra.mxu0 0
    %105 = vmatprep.subr.bf16.mxu0 0
    %106 = vmatpush1.bf16.xpose.msra.mxu0 0
    %107 = vmatprep.subr.bf16.mxu0 0
    %108 = vmatpush1.bf16.xpose.msra.mxu0 0
    %109 = vmatprep.subr.bf16.mxu0 0
    %110 = vmatpush1.bf16.xpose.msra.mxu0 0
    %111 = vmatprep.subr.bf16.mxu0 0
    %112 = vmatpush1.bf16.xpose.msra.mxu0 0
    %113 = vmatprep.subr.bf16.mxu0 0
    %114 = vmatpush1.bf16.xpose.msra.mxu0 0
    %115 = vmatprep.subr.bf16.mxu0 0
    %116 = vmatpush1.bf16.xpose.msra.mxu0 0
    %117 = vmatprep.subr.bf16.mxu0 0
    %118 = vmatpush1.bf16.xpose.msra.mxu0 0
    %119 = vmatprep.subr.bf16.mxu0 0
    %120 = vmatpush1.bf16.xpose.msra.mxu0 0
    %121 = vmatprep.subr.bf16.mxu0 0
    %122 = vmatpush1.bf16.xpose.msra.mxu0 0
    %123 = vmatprep.subr.bf16.mxu0 0
    %124 = vmatpush1.bf16.xpose.msra.mxu0 0
    %125 = vmatprep.subr.bf16.mxu0 0
    %126 = vmatpush1.bf16.xpose.msra.mxu0 0
    %127 = vmatprep.subr.bf16.mxu0 0
    %128 = vmatpush1.bf16.xpose.msra.mxu0 0
    %129 = vmatprep.mubr.bf16.mxu0 0
    %130 = vmatmul.mubr.bf16.gmra.mrb[0].mxu0 %v94
    %v131 = vpop.f32.mrb[0].mxu0
    %v132 = vadd.f32 %v96, %v131
    %v133 = vpop.f32.mrb[0].mxu0
    %v134 = vpop.f32.mrb[0].mxu0
    %v135 = vpop.f32.mrb[0].mxu0
    %136 = vdwg.mxu0
    %v137 = vxor.u32 %v132, 2147483648
    %v138 = vmul.f32 %v137, 1.442695
    %v139 = vpow.pop %v138
    %v140 = vadd.f32 %v139, 1.0
    %v141 = vrcp.pop %v140
    %v142 = vmul.f32 1.0, %v141
    %vm143 = vcmask 57344
    %144 = vst.msk [vmem:[#allocation3] sm:$0x1] %vm143, %v142
    // Predicated region
    $region22: #{mlp_probe_forward.1} parent=1 // pred_check
      _
    $region23: #{mlp_probe_forward.1} parent=1 // pred_check_branch
      %146 = sbr.rel (0) target = $region25
    $region24: #{mlp_probe_forward.1} parent=1 // pred_region
      %s148 = ssub.s32 16, 16
      %149 = vsyncadd [#allocation4], %s148
      %s151 = sshll.u32 [#allocation3], 4
      %s152 = int_to_ptr.vmem [resolvable:$true] %s151
      %154 = dma.vmem_to_hbm [thread:$0]  %s152, 16, %s5, [#allocation4]
    $region25: #{mlp_probe_forward.1} parent=1 // pred_fallthru
      _
    // Predicated region
    $region26: #{mlp_probe_forward.1} parent=1 // pred_check
      _
    $region27: #{mlp_probe_forward.1} parent=1 // pred_check_branch
      %156 = sbr.rel (0) target = $region29
    $region28: #{mlp_probe_forward.1} parent=1 // pred_region
      %157 = dma.done [#allocation4], 16
    $region29: #{mlp_probe_forward.1} parent=1 // pred_fallthru
      _
    %158 = vsyncpa [#allocation4], 1

</llo_original>
